<compile_context>
chip_gen: v6e
topology: v6e:2x2x1
jax: 0.10.0
libtpu: 0.0.40
codegen_flags: <defaults>
</compile_context>

<pallas_src>
import functools
import math

import jax
import jax.numpy as jnp
from jax.experimental import pallas as pl
from jax.experimental.pallas import tpu as pltpu

_VMEM_LIMIT_BYTES = 32 * 1024 * 1024   # explicit scoped-VMEM raise (v5e) / safe cap (v7x)
_TILE_BYTE_BUDGET = 12 * 1024 * 1024   # double-buffered in+out tiles live here
_MAX_TILE_ROWS = 2048


def _round_up(a, b):
    return (a + b - 1) // b * b


def _pick_row_tile(rows, bytes_per_row):
    """Row tile: large (amortize ~0.35us/step), VMEM-budgeted, keep >=2 grid blocks."""
    if rows <= 8:
        return max(rows, 1)                      # single tiny block == full dim (legal)
    fit = max(8, _TILE_BYTE_BUDGET // max(2 * bytes_per_row, 1))
    t = min(_MAX_TILE_ROWS, fit)
    t = min(t, _round_up(pl.cdiv(rows, 2), 8))   # >= 2 blocks for v7x's two TensorCores
    return int(max(8, (t // 8) * 8))


def _fourier_packed_kernel(xp_ref, wp_ref, o_ref, *, half, out_features):
    # xp_ref: (t, G*in)      G consecutive input rows packed along lanes
    # wp_ref: (G*in, G*out)  block-diagonal [wt | wt] blocks, 2*pi pre-folded, f32
    # o_ref : (t, G*out)     lane-dense [cos | sin] per packed row
    xp = xp_ref[...].astype(jnp.float32)
    f = jnp.dot(xp, wp_ref[...], preferred_element_type=jnp.float32)   # MXU
    col = jax.lax.broadcasted_iota(jnp.int32, f.shape, 1)
    is_cos = (col % out_features) < half
    o_ref[...] = jnp.where(is_cos, jnp.cos(f), jnp.sin(f)).astype(o_ref.dtype)


def _fourier_general_kernel(x_ref, wt_ref, o_ref, *, half):
    # x_ref: (t, in);  wt_ref: (in, half) f32 with 2*pi pre-folded;  o_ref: (t, 2*half)
    x = x_ref[...].astype(jnp.float32)
    f = jnp.dot(x, wt_ref[...], preferred_element_type=jnp.float32)    # MXU
    o_ref[:, pl.ds(0, half)] = jnp.cos(f).astype(o_ref.dtype)
    o_ref[:, pl.ds(half, half)] = jnp.sin(f).astype(o_ref.dtype)


def fourier_features(x, weight):
    """x: (..., in_features); weight: (out_features//2, in_features) -> (..., out_features)."""
    in_features = x.shape[-1]
    half, w_in = weight.shape
    assert w_in == in_features, (w_in, in_features)
    out_features = 2 * half

    lead = x.shape[:-1]
    x2 = x.reshape((-1, in_features))            # fold all leading dims into M
    m = x2.shape[0]
    if m == 0:
        return jnp.zeros(lead + (out_features,), dtype=x.dtype)

    # Fold 2*pi into the tiny resident weight once; keep frequencies in f32.
    wt = (2.0 * math.pi) * weight.T.astype(jnp.float32)      # (in, half)

    itemsize = jnp.dtype(x.dtype).itemsize
    params = pltpu.CompilerParams(
        dimension_semantics=("parallel",),
        vmem_limit_bytes=_VMEM_LIMIT_BYTES,
    )

    use_packed = (out_features < 128 and 128 % out_features == 0
                  and m % (128 // out_features) == 0)
    if use_packed:
        # Lane-dense path: pack G rows per output row so the store covers 128 lanes.
        g = 128 // out_features
        rows = m // g
        xp = x2.reshape((rows, g * in_features))              # free contiguous reshape
        # Block-diagonal weight: block j maps packed row j -> [cos-freqs | sin-freqs].
        wt2 = jnp.concatenate([wt, wt], axis=1)               # (in, out)
        w_pack = jnp.einsum('ij,ab->iajb', jnp.eye(g, dtype=jnp.float32),
                            wt2).reshape((g * in_features, g * out_features))
        bytes_per_row = g * (in_features * itemsize + out_features * itemsize)
        t = _pick_row_tile(rows, bytes_per_row)
        out = pl.pallas_call(
            functools.partial(_fourier_packed_kernel, half=half,
                              out_features=out_features),
            out_shape=jax.ShapeDtypeStruct((rows, g * out_features), x.dtype),
            grid=(pl.cdiv(rows, t),),
            in_specs=[
                pl.BlockSpec((t, g * in_features), lambda i: (i, 0)),
                # Tiny, grid-invariant weight; stays resident in VMEM.
                pl.BlockSpec((g * in_features, g * out_features), lambda i: (0, 0)),
            ],
            out_specs=pl.BlockSpec((t, g * out_features), lambda i: (i, 0)),
            compiler_params=params,
        )(xp, w_pack)
        return out.reshape(lead + (out_features,))            # free contiguous reshape

    # General path (out_features >= 128 or shapes the packed layout can't cover).
    # TODO(synk): dedicated VPU-broadcast path for in_features == 1 timestep embeddings.
    bytes_per_row = in_features * itemsize + out_features * itemsize
    t = _pick_row_tile(m, bytes_per_row)
    out = pl.pallas_call(
        functools.partial(_fourier_general_kernel, half=half),
        out_shape=jax.ShapeDtypeStruct((m, out_features), x.dtype),
        grid=(pl.cdiv(m, t),),
        in_specs=[
            pl.BlockSpec((t, in_features), lambda i: (i, 0)),
            # Tiny, grid-invariant weight; stays resident in VMEM.
            pl.BlockSpec((in_features, half), lambda i: (0, 0)),
        ],
        out_specs=pl.BlockSpec((t, out_features), lambda i: (i, 0)),
        compiler_params=params,
    )(x2, wt)
    return out.reshape(lead + (out_features,))


def _reference(x, weight):
    # Pure-JAX reference of the PyTorch forward.
    f = 2.0 * math.pi * jnp.einsum('...i,oi->...o',
                                   x.astype(jnp.float32), weight.astype(jnp.float32))
    return jnp.concatenate([jnp.cos(f), jnp.sin(f)], axis=-1).astype(x.dtype)


if __name__ == "__main__":
    key = jax.random.PRNGKey(0)
    k_x, k_w, k_x2, k_w3, k_x3 = jax.random.split(key, 5)

    # 1) Typical FourierFeatures shape -> lane-dense packed path (out_features < 128).
    batch, seq, in_features, out_features = 2, 8, 16, 32
    std = 1.0
    x = jax.random.normal(k_x, (batch, seq, in_features), dtype=jnp.float32)
    weight = jax.random.normal(
        k_w, (out_features // 2, in_features), dtype=jnp.float32) * std
    y = jax.block_until_ready(fourier_features(x, weight))
    y_ref = _reference(x, weight)
    assert y.shape == (batch, seq, out_features), y.shape
    assert jnp.allclose(y, y_ref, atol=1e-4, rtol=1e-4), \
        f"max err {jnp.max(jnp.abs(y - y_ref))}"

    # 2) Packed path with a ragged grid tail (row count not a multiple of the tile).
    x2 = jax.random.normal(k_x2, (3, 12, in_features), dtype=jnp.float32)
    y2 = jax.block_until_ready(fourier_features(x2, weight))
    assert jnp.allclose(y2, _reference(x2, weight), atol=1e-4, rtol=1e-4), \
        f"max err {jnp.max(jnp.abs(y2 - _reference(x2, weight)))}"

    # 3) General path (out_features >= 128) with a ragged tail.
    out_features3 = 256
    w3 = jax.random.normal(
        k_w3, (out_features3 // 2, in_features), dtype=jnp.float32) * std
    x3 = jax.random.normal(k_x3, (2, 7, in_features), dtype=jnp.float32)
    y3 = jax.block_until_ready(fourier_features(x3, w3))
    assert y3.shape == (2, 7, out_features3), y3.shape
    assert jnp.allclose(y3, _reference(x3, w3), atol=1e-4, rtol=1e-4), \
        f"max err {jnp.max(jnp.abs(y3 - _reference(x3, w3)))}"

    print("KERNEL_OK")
</pallas_src>

<mosaic_0001>
module attributes {stable_mosaic.version = 11 : i64} {
  func.func @_fourier_packed_kernel(%arg0: i32, %arg1: memref<4x64xf32, #tpu.memory_space<vmem>>, %arg2: memref<64x128xf32, #tpu.memory_space<vmem>>, %arg3: memref<4x128xf32, #tpu.memory_space<vmem>>) attributes {dimension_semantics = [#tpu.dimension_semantics<parallel>], iteration_bounds = array<i64: 1>, scalar_prefetch = 0 : i64, scratch_operands = 0 : i64, tpu.core_type = #tpu.core_type<tc>, window_params = [{transform_indices = @transform_0, window_bounds = array<i64: 4, 64>}, {pipeline_mode = #tpu.pipeline_mode<synchronous>, transform_indices = @transform_1, window_bounds = array<i64: 64, 128>}, {transform_indices = @transform_2, window_bounds = array<i64: 4, 128>}]} {
    %c0 = arith.constant 0 : index
    %c0_0 = arith.constant 0 : index
    %0 = vector.load %arg1[%c0, %c0_0] : memref<4x64xf32, #tpu.memory_space<vmem>>, vector<4x64xf32>
    %c0_1 = arith.constant 0 : index
    %c0_2 = arith.constant 0 : index
    %1 = vector.load %arg2[%c0_1, %c0_2] : memref<64x128xf32, #tpu.memory_space<vmem>>, vector<64x128xf32>
    %cst = arith.constant dense<0.000000e+00> : vector<4x128xf32>
    %2 = tpu.matmul %0, %1, %cst {dimension_numbers = #tpu.dot_dimension_numbers<[1], [0], [0], [1], [0, 0, 1, 1], [], []>} : vector<4x64xf32>, vector<64x128xf32>, vector<4x128xf32> -> vector<4x128xf32>
    %3 = tpu.iota {dimensions = array<i32: 1>} : vector<4x128xi32>
    %c32_i32 = arith.constant 32 : i32
    %c0_i32 = arith.constant 0 : i32
    %4 = arith.cmpi eq, %c32_i32, %c0_i32 : i32
    %c1_i32 = arith.constant 1 : i32
    %5 = arith.select %4, %c1_i32, %c32_i32 : i32
    %6 = vector.broadcast %5 : i32 to vector<4x128xi32>
    %7 = arith.remsi %3, %6 : vector<4x128xi32>
    %c0_i32_3 = arith.constant 0 : i32
    %8 = vector.broadcast %c0_i32_3 : i32 to vector<4x128xi32>
    %9 = arith.cmpi ne, %7, %8 : vector<4x128xi32>
    %c0_i32_4 = arith.constant 0 : i32
    %10 = vector.broadcast %c0_i32_4 : i32 to vector<4x128xi32>
    %11 = arith.cmpi slt, %7, %10 : vector<4x128xi32>
    %c0_i32_5 = arith.constant 0 : i32
    %12 = arith.cmpi slt, %5, %c0_i32_5 : i32
    %13 = vector.broadcast %12 : i1 to vector<4x128xi1>
    %14 = vector.broadcast %13 : vector<4x128xi1> to vector<4x128xi1>
    %15 = arith.xori %11, %14 : vector<4x128xi1>
    %16 = arith.andi %15, %9 : vector<4x128xi1>
    %17 = vector.broadcast %5 : i32 to vector<4x128xi32>
    %18 = arith.addi %7, %17 : vector<4x128xi32>
    %19 = arith.select %16, %18, %7 : vector<4x128xi1>, vector<4x128xi32>
    %c16_i32 = arith.constant 16 : i32
    %20 = vector.broadcast %c16_i32 : i32 to vector<4x128xi32>
    %21 = arith.cmpi slt, %19, %20 : vector<4x128xi32>
    %22 = math.cos %2 : vector<4x128xf32>
    %23 = math.sin %2 : vector<4x128xf32>
    %24 = arith.select %21, %22, %23 : vector<4x128xi1>, vector<4x128xf32>
    %c0_6 = arith.constant 0 : index
    %c0_7 = arith.constant 0 : index
    %25 = vector.load %arg3[%c0_6, %c0_7] : memref<4x128xf32, #tpu.memory_space<vmem>>, vector<4x128xf32>
    tpu.vector_store %arg3[%c0_6, %c0_7], %24 {strides = array<i32>} : memref<4x128xf32, #tpu.memory_space<vmem>>, vector<4x128xf32>,
    return
  }
  func.func @transform_0(%arg0: i32) -> (i32, i32) {
    %c0_i32 = arith.constant 0 : i32
    %c0_i32_0 = arith.constant 0 : i32
    return %arg0, %c0_i32 : i32, i32
  }
  func.func @transform_1(%arg0: i32) -> (i32, i32) {
    %c0_i32 = arith.constant 0 : i32
    %c0_i32_0 = arith.constant 0 : i32
    %c0_i32_1 = arith.constant 0 : i32
    return %c0_i32, %c0_i32_0 : i32, i32
  }
  func.func @transform_2(%arg0: i32) -> (i32, i32) {
    %c0_i32 = arith.constant 0 : i32
    %c0_i32_0 = arith.constant 0 : i32
    return %arg0, %c0_i32 : i32, i32
  }
}

</mosaic_0001>

<llo_original>
// kernel: tpu_custom_call.1
$region0: #{tpu_custom_call.1}
  #allocation0 [shape = 'u32[]', space=smem, size = 0x4, offset = 0x4, fixed_abs, tag = 'smem constant byte address 0x4 - core index']
  #allocation1 [shape = 'u32[144,128]{1,0:T(1,128)}', space=vmem, size = 0x12000, scoped, tag = 'internal scratch']
  %s0 = inlined_call_operand.hbm [shape: f32[4,64], index: 0, kind: input, shape index: {}]
  %s1 = inlined_call_operand.hbm [shape: f32[64,128], index: 1, kind: input, shape index: {}]
  %s2 = inlined_call_operand.hbm [shape: f32[4,128], index: 2, kind: output, shape index: {}]
  %s3 = sld [smem:[#allocation0]]
  $region26: #{tpu_custom_call.1} parent=0
    _
  %s5 = ssub.s32 1, %s3
  %s6 = scalar_select 0, %s5, %s3
  $region1: #{tpu_custom_call.1} parent=0
    #allocation2 [shape = 'u8[2048]{0}', space=vmem, size = 0x800, scoped, tag = 'input window, operand 0, single buffered']
    #allocation3 [shape = 's32[1]{0}', space=sflag, size = 0x4, scoped, tag = 'scoped memory for tpu_custom_call.1']
    #allocation4 [shape = 's32[1]{0}', space=sflag, size = 0x4, scoped, tag = 'scoped memory for tpu_custom_call.1']
    #allocation5 [shape = 'u8[32768]{0}', space=vmem, size = 0x8000, scoped, tag = 'input window, operand 1, single buffered']
    #allocation6 [shape = 's32[1]{0}', space=sflag, size = 0x4, scoped, tag = 'scoped memory for tpu_custom_call.1']
    #allocation7 [shape = 'u8[2048]{0}', space=vmem, size = 0x800, scoped, tag = 'output window, operand 0, single buffered']
    %7 = vsyncpa [#allocation3], 0
    %8 = vsyncpa [#allocation6], 0
    %9 = vsyncpa [#allocation4], 0
    // Predicated region
    $region2: #{tpu_custom_call.1} parent=1 // pred_check
      _
    $region3: #{tpu_custom_call.1} parent=1 // pred_check_branch
      %11 = sbr.rel (0) target = $region5
    $region4: #{tpu_custom_call.1} parent=1 // pred_region
      %s13 = ssub.s32 64, 64
      %14 = vsyncadd [#allocation3], %s13
      %s16 = sshll.u32 [#allocation2], 4
      %s17 = int_to_ptr.vmem [resolvable:$true] %s16
      %19 = dma.hbm_to_vmem [thread:$0]  %s0, 64, %s17, [#allocation3]
    $region5: #{tpu_custom_call.1} parent=1 // pred_fallthru
      _
    // Predicated region
    $region6: #{tpu_custom_call.1} parent=1 // pred_check
      _
    $region7: #{tpu_custom_call.1} parent=1 // pred_check_branch
      %21 = sbr.rel (0) target = $region9
    $region8: #{tpu_custom_call.1} parent=1 // pred_region
      %s23 = ssub.s32 1024, 1024
      %24 = vsyncadd [#allocation6], %s23
      %s25 = sshll.u32 [#allocation5], 4
      %s26 = int_to_ptr.vmem [resolvable:$true] %s25
      %31 = dma.hbm_to_vmem [thread:$0]  %s1, 1024, %s26, [#allocation6], 128, 128, 8
    $region9: #{tpu_custom_call.1} parent=1 // pred_fallthru
      _
    // Predicated region
    $region10: #{tpu_custom_call.1} parent=1 // pred_check
      _
    $region11: #{tpu_custom_call.1} parent=1 // pred_check_branch
      %33 = sbr.rel (0) target = $region13
    $region12: #{tpu_custom_call.1} parent=1 // pred_region
      %34 = dma.done [#allocation3], 64
    $region13: #{tpu_custom_call.1} parent=1 // pred_fallthru
      _
    // Predicated region
    $region14: #{tpu_custom_call.1} parent=1 // pred_check
      _
    $region15: #{tpu_custom_call.1} parent=1 // pred_check_branch
      %36 = sbr.rel (0) target = $region17
    $region16: #{tpu_custom_call.1} parent=1 // pred_region
      %37 = dma.done [#allocation6], 1024
    $region17: #{tpu_custom_call.1} parent=1 // pred_fallthru
      _
    %v38 = vld [vmem:[#allocation2] sm:$0xf]
    %v39 = vld [vmem:[#allocation5] sm:$0xff]
    %v40 = vld [vmem:[#allocation5 + $0x8] sm:$0xff]
    %v41 = vld [vmem:[#allocation5 + $0x10] sm:$0xff]
    %v42 = vld [vmem:[#allocation5 + $0x18] sm:$0xff]
    %v43 = vld [vmem:[#allocation5 + $0x20] sm:$0xff]
    %v44 = vld [vmem:[#allocation5 + $0x28] sm:$0xff]
    %v45 = vld [vmem:[#allocation5 + $0x30] sm:$0xff]
    %v46 = vld [vmem:[#allocation5 + $0x38] sm:$0xff]
    %vm47 = vcmask 523264
    %v49 = vsel %vm47, %v38, 0
    %51 = vmatprep.subr.mxu0 0.0
    %52 = vmatpush1.msra.mxu0 0.0
    %53 = vmatprep.subr.mxu0 0.0
    %54 = vmatpush1.msra.mxu0 0.0
    %55 = vmatprep.subr.mxu0 0.0
    %56 = vmatpush1.msra.mxu0 0.0
    %57 = vmatprep.subr.mxu0 0.0
    %58 = vmatpush1.msra.mxu0 0.0
    %59 = vmatprep.subr.mxu0 0.0
    %60 = vmatpush1.msra.mxu0 0.0
    %61 = vmatprep.subr.mxu0 0.0
    %62 = vmatpush1.msra.mxu0 0.0
    %63 = vmatprep.subr.mxu0 0.0
    %64 = vmatpush1.msra.mxu0 0.0
    %65 = vmatprep.subr.mxu0 0.0
    %66 = vmatpush1.msra.mxu0 0.0
    %67 = vmatprep.subr.mxu0 0.0
    %68 = vmatpush1.msra.mxu0 %v46
    %69 = vmatprep.subr.mxu0 0.0
    %70 = vmatpush1.msra.mxu0 %v45
    %71 = vmatprep.subr.mxu0 0.0
    %72 = vmatpush1.msra.mxu0 %v44
    %73 = vmatprep.subr.mxu0 0.0
    %74 = vmatpush1.msra.mxu0 %v43
    %75 = vmatprep.subr.mxu0 0.0
    %76 = vmatpush1.msra.mxu0 %v42
    %77 = vmatprep.subr.mxu0 0.0
    %78 = vmatpush1.msra.mxu0 %v41
    %79 = vmatprep.subr.mxu0 0.0
    %80 = vmatpush1.msra.mxu0 %v40
    %81 = vmatprep.subr.mxu0 0.0
    %82 = vmatpush1.msra.mxu0 %v39
    %83 = vmatprep.subr.mxu0 0.0
    %84 = vmatpush2.msra.mxu0 0.0
    %85 = vmatprep.subr.mxu0 0.0
    %86 = vmatpush2.msra.mxu0 0.0
    %87 = vmatprep.subr.mxu0 0.0
    %88 = vmatpush2.msra.mxu0 0.0
    %89 = vmatprep.subr.mxu0 0.0
    %90 = vmatpush2.msra.mxu0 0.0
    %91 = vmatprep.subr.mxu0 0.0
    %92 = vmatpush2.msra.mxu0 0.0
    %93 = vmatprep.subr.mxu0 0.0
    %94 = vmatpush2.msra.mxu0 0.0
    %95 = vmatprep.subr.mxu0 0.0
    %96 = vmatpush2.msra.mxu0 0.0
    %97 = vmatprep.subr.mxu0 0.0
    %98 = vmatpush2.msra.mxu0 0.0
    %99 = vmatprep.subr.mxu0 0.0
    %100 = vmatpush2.msra.mxu0 0.0
    %101 = vmatprep.subr.mxu0 0.0
    %102 = vmatpush2.msra.mxu0 0.0
    %103 = vmatprep.subr.mxu0 0.0
    %104 = vmatpush2.msra.mxu0 0.0
    %105 = vmatprep.subr.mxu0 0.0
    %106 = vmatpush2.msra.mxu0 0.0
    %107 = vmatprep.subr.mxu0 0.0
    %108 = vmatpush2.msra.mxu0 0.0
    %109 = vmatprep.subr.mxu0 0.0
    %110 = vmatpush2.msra.mxu0 0.0
    %111 = vmatprep.subr.mxu0 0.0
    %112 = vmatpush2.msra.mxu0 0.0
    %113 = vmatprep.subr.mxu0 0.0
    %114 = vmatpush2.msra.mxu0 0.0
    %115 = vmatprep.mubr.f32.mxu0 0.0
    %116 = vmatmul.mubr.f32.gmra.mxu0 %v49
    %v117 = vpop.f32.mrf.mxu0
    %v118 = vadd.f32 0.0, %v117
    %v119 = vpop.f32.mrf.mxu0
    %120 = vdwg.mxu0
    %v121 = vlaneseq
    %v122 = vand.u32 %v121, 127
    %vm123 = vcmp.lt.s32.totalorder %v122, 0
    %v124 = vsub.s32 0, %v122
    %v125 = vsel %vm123, %v124, %v122
    %v126 = vshrl.u32 %v125, 5
    %v127 = vand.u32 %v125, 31
    %v128 = vsub.s32 0, %v127
    %v129 = vsel %vm123, %v128, %v127
    %vm130 = vcmp.ne.s32.totalorder %v129, 0
    %vm131 = vcmp.lt.s32.totalorder %v129, 0
    %vm132 = vmand %vm131, %vm130
    %v133 = vadd.s32 %v129, 32
    %v134 = vsel %vm132, %v133, %v129
    %vm135 = vcmp.lt.s32.totalorder %v134, 16
    %v136 = vand.u32 2147483647, %v118
    %vm137 = vcmp.le.f32.partialorder %v136, 0.7853982
    %vm138 = vcmp.lt.s32.totalorder %v118, 0
    %v139 = vand.u32 %v118, 2139095040
    %v140 = vshrl.u32 %v139, 23
    %v141 = vsub.s32 %v140, 127
    %v142 = vand.u32 2147483647, %v118
    %v143 = vand.u32 %v142, 8388607
    %v144 = vor.u32 %v143, 8388608
    %v145 = vsub.s32 0, %v144
    %v146 = vadd.s32 %v141, 1
    %vm147 = vcmp.gt.s32.totalorder %v146, 0
    %v148 = vsel %vm147, %v146, 0
    %v149 = vshrl.u32 %v148, 5
    %v150 = vand.u32 %v148, 31
    %v151 = vsub.s32 32, %v150
    %v152 = vshrl.u32 683565275, %v151
    %v153 = vshll.u32 683565275, %v150
    %v154 = vshrl.u32 2475754826, %v151
    %v155 = vor.u32 %v153, %v154
    %v156 = vshll.u32 2475754826, %v150
    %v157 = vshrl.u32 2131351028, %v151
    %v158 = vor.u32 %v156, %v157
    %v159 = vshll.u32 2131351028, %v150
    %v160 = vshrl.u32 2102212464, %v151
    %v161 = vor.u32 %v159, %v160
    %v162 = vshll.u32 2102212464, %v150
    %v163 = vshrl.u32 920167782, %v151
    %v164 = vor.u32 %v162, %v163
    %v165 = vshll.u32 920167782, %v150
    %v166 = vshrl.u32 1326507024, %v151
    %v167 = vor.u32 %v165, %v166
    %vm168 = vcmp.lt.s32.totalorder %v149, 1
    %vm169 = vcmp.lt.s32.totalorder %v149, 2
    %vm170 = vcmp.lt.s32.totalorder %v149, 3
    %vm171 = vcmp.lt.s32.totalorder %v149, 4
    %v172 = vsel %vm168, %v152, %v155
    %v173 = vsel %vm171, %v161, 2102212464
    %v174 = vsel %vm170, %v158, %v173
    %v175 = vsel %vm169, %v172, %v174
    %v176 = vsel %vm168, %v155, %v158
    %v177 = vsel %vm171, %v164, 920167782
    %v178 = vsel %vm170, %v161, %v177
    %v179 = vsel %vm169, %v176, %v178
    %v180 = vsel %vm168, %v158, %v161
    %v181 = vsel %vm171, %v167, 1326507024
    %v182 = vsel %vm170, %v164, %v181
    %v183 = vsel %vm169, %v180, %v182
    %v184 = vshll.u32 %v144, 8
    %v185 = vmul.u32.u64.compose %v184, %v183
    %v186 = vextract.low.u32 %v185
    %v187 = vextract.high.u32 %v185
    %v188 = vmul.u32.u64.compose %v184, %v179
    %v189 = vextract.low.u32 %v188
    %v190 = vextract.high.u32 %v188
    %v191 = vmul.u32 %v184, %v175
    %v192 = vadd.s32 %v187, %v189
    %vm193 = vc.u32 %v187, %v189
    %v194 = vadd.s32 %v190, 1
    %v195 = vsel %vm193, %v194, %v190
    %v196 = vadd.s32 %v191, %v195
    %v197 = vadd.s32 %v196, 536870912
    %v198 = vshrl.u32 %v197, 30
    %v199 = vshll.u32 %v198, 30
    %v200 = vsub.s32 %v196, %v199
    %vm201 = vcmp.lt.s32.totalorder %v200, 0
    %v202 = vsub.s32 0, %v200
    %v203 = vsel %vm201, %v202, %v200
    %v204 = vclz %v203
    %v205 = vsub.s32 %v204, 2
    %vm206 = vcmp.gt.s32.totalorder 0, %v205
    %v207 = vsel %vm206, 0, %v205
    %v208 = vsub.s32 32, %v207
    %v209 = vshll.u32 %v200, %v207
    %v210 = vshrl.u32 %v192, %v208
    %v211 = vor.u32 %v209, %v210
    %v212 = vsub.s32 4294967266, %v207
    %v213 = vadd.s32 %v212, 127
    %v214 = vshll.u32 %v213, 23
    %v215 = vor.u32 4788187, %v214
    %v216 = vand.u32 2147483647, %v215
    %v218 = vcvt.s32.f32 %v211
    %v219 = vmul.f32 %v218, %v216
    %v220 = vxor.u32 %v219, 2147483648
    %v221 = vsel %vm138, %v220, %v219
    %v222 = vsub.s32 4, %v198
    %v223 = vsel %vm138, %v222, %v198
    %v224 = vsel %vm137, %v118, %v221
    %v225 = vsel %vm137, 0, %v223
    %v226 = vcosq.f32.pop %v224
    %v227 = vsinq.f32.pop %v224
    %vm228 = vweird.f32 %v118
    %v229 = vand.u32 %v225, 3
    %vm230 = vcmp.lt.s32.totalorder %v229, 2
    %vm231 = vcmp.eq.s32.totalorder %v229, 0
    %v232 = vxor.u32 %v227, 2147483648
    %v233 = vsel %vm231, %v226, %v232
    %vm234 = vcmp.eq.s32.totalorder %v229, 2
    %v235 = vxor.u32 %v226, 2147483648
    %v236 = vsel %vm234, %v235, %v227
    %v237 = vsel %vm230, %v233, %v236
    %v238 = vsel %vm228, nan, %v237
    %v239 = vand.u32 2147483647, %v118
    %vm240 = vcmp.le.f32.partialorder %v239, 0.7853982
    %vm241 = vcmp.lt.s32.totalorder %v118, 0
    %v242 = vand.u32 %v118, 2139095040
    %v243 = vshrl.u32 %v242, 23
    %v244 = vsub.s32 %v243, 127
    %v245 = vand.u32 2147483647, %v118
    %v246 = vand.u32 %v245, 8388607
    %v247 = vor.u32 %v246, 8388608
    %v248 = vsub.s32 0, %v247
    %v249 = vadd.s32 %v244, 1
    %vm250 = vcmp.gt.s32.totalorder %v249, 0
    %v251 = vsel %vm250, %v249, 0
    %v252 = vshrl.u32 %v251, 5
    %v253 = vand.u32 %v251, 31
    %v254 = vsub.s32 32, %v253
    %v255 = vshrl.u32 683565275, %v254
    %v256 = vshll.u32 683565275, %v253
    %v257 = vshrl.u32 2475754826, %v254
    %v258 = vor.u32 %v256, %v257
    %v259 = vshll.u32 2475754826, %v253
    %v260 = vshrl.u32 2131351028, %v254
    %v261 = vor.u32 %v259, %v260
    %v262 = vshll.u32 2131351028, %v253
    %v263 = vshrl.u32 2102212464, %v254
    %v264 = vor.u32 %v262, %v263
    %v265 = vshll.u32 2102212464, %v253
    %v266 = vshrl.u32 920167782, %v254
    %v267 = vor.u32 %v265, %v266
    %v268 = vshll.u32 920167782, %v253
    %v269 = vshrl.u32 1326507024, %v254
    %v270 = vor.u32 %v268, %v269
    %vm271 = vcmp.lt.s32.totalorder %v252, 1
    %vm272 = vcmp.lt.s32.totalorder %v252, 2
    %vm273 = vcmp.lt.s32.totalorder %v252, 3
    %vm274 = vcmp.lt.s32.totalorder %v252, 4
    %v275 = vsel %vm271, %v255, %v258
    %v276 = vsel %vm274, %v264, 2102212464
    %v277 = vsel %vm273, %v261, %v276
    %v278 = vsel %vm272, %v275, %v277
    %v279 = vsel %vm271, %v258, %v261
    %v280 = vsel %vm274, %v267, 920167782
    %v281 = vsel %vm273, %v264, %v280
    %v282 = vsel %vm272, %v279, %v281
    %v283 = vsel %vm271, %v261, %v264
    %v284 = vsel %vm274, %v270, 1326507024
    %v285 = vsel %vm273, %v267, %v284
    %v286 = vsel %vm272, %v283, %v285
    %v287 = vshll.u32 %v247, 8
    %v288 = vmul.u32.u64.compose %v287, %v286
    %v289 = vextract.low.u32 %v288
    %v290 = vextract.high.u32 %v288
    %v291 = vmul.u32.u64.compose %v287, %v282
    %v292 = vextract.low.u32 %v291
    %v293 = vextract.high.u32 %v291
    %v294 = vmul.u32 %v287, %v278
    %v295 = vadd.s32 %v290, %v292
    %vm296 = vc.u32 %v290, %v292
    %v297 = vadd.s32 %v293, 1
    %v298 = vsel %vm296, %v297, %v293
    %v299 = vadd.s32 %v294, %v298
    %v300 = vadd.s32 %v299, 536870912
    %v301 = vshrl.u32 %v300, 30
    %v302 = vshll.u32 %v301, 30
    %v303 = vsub.s32 %v299, %v302
    %vm304 = vcmp.lt.s32.totalorder %v303, 0
    %v305 = vsub.s32 0, %v303
    %v306 = vsel %vm304, %v305, %v303
    %v307 = vclz %v306
    %v308 = vsub.s32 %v307, 2
    %vm309 = vcmp.gt.s32.totalorder 0, %v308
    %v310 = vsel %vm309, 0, %v308
    %v311 = vsub.s32 32, %v310
    %v312 = vshll.u32 %v303, %v310
    %v313 = vshrl.u32 %v295, %v311
    %v314 = vor.u32 %v312, %v313
    %v315 = vsub.s32 4294967266, %v310
    %v316 = vadd.s32 %v315, 127
    %v317 = vshll.u32 %v316, 23
    %v318 = vor.u32 4788187, %v317
    %v319 = vand.u32 2147483647, %v318
    %v321 = vcvt.s32.f32 %v314
    %v322 = vmul.f32 %v321, %v319
    %v323 = vxor.u32 %v322, 2147483648
    %v324 = vsel %vm241, %v323, %v322
    %v325 = vsub.s32 4, %v301
    %v326 = vsel %vm241, %v325, %v301
    %v327 = vsel %vm240, %v118, %v324
    %v328 = vsel %vm240, 0, %v326
    %v329 = vcosq.f32.pop %v327
    %v330 = vsinq.f32.pop %v327
    %vm331 = vweird.f32 %v118
    %v332 = vadd.s32 %v328, 3
    %v333 = vand.u32 %v332, 3
    %vm334 = vcmp.lt.s32.totalorder %v333, 2
    %vm335 = vcmp.eq.s32.totalorder %v333, 0
    %v336 = vxor.u32 %v330, 2147483648
    %v337 = vsel %vm335, %v329, %v336
    %vm338 = vcmp.eq.s32.totalorder %v333, 2
    %v339 = vxor.u32 %v329, 2147483648
    %v340 = vsel %vm338, %v339, %v330
    %v341 = vsel %vm334, %v337, %v340
    %v342 = vsel %vm331, nan, %v341
    %v343 = vsel %vm135, %v238, %v342
    %344 = vst [vmem:[#allocation7] sm:$0xf] %v343
    // Predicated region
    $region18: #{tpu_custom_call.1} parent=1 // pred_check
      _
    $region19: #{tpu_custom_call.1} parent=1 // pred_check_branch
      %346 = sbr.rel (0) target = $region21
    $region20: #{tpu_custom_call.1} parent=1 // pred_region
      %s348 = ssub.s32 64, 64
      %349 = vsyncadd [#allocation4], %s348
      %s351 = sshll.u32 [#allocation7], 4
      %s352 = int_to_ptr.vmem [resolvable:$true] %s351
      %354 = dma.vmem_to_hbm [thread:$0]  %s352, 64, %s2, [#allocation4]
    $region21: #{tpu_custom_call.1} parent=1 // pred_fallthru
      _
    // Predicated region
    $region22: #{tpu_custom_call.1} parent=1 // pred_check
      _
    $region23: #{tpu_custom_call.1} parent=1 // pred_check_branch
      %356 = sbr.rel (0) target = $region25
    $region24: #{tpu_custom_call.1} parent=1 // pred_region
      %357 = dma.done [#allocation4], 64
    $region25: #{tpu_custom_call.1} parent=1 // pred_fallthru
      _
    %358 = vsyncpa [#allocation3], 1
    %359 = vsyncpa [#allocation6], 1
    %360 = vsyncpa [#allocation4], 1

</llo_original>
